<compile_context>
chip_gen: v7x
topology: tpu7x:2x2x1
jax: 0.10.0
libtpu: 0.0.40
codegen_flags: <defaults>
</compile_context>

<pallas_src>
import functools
import math

import jax
import jax.numpy as jnp
from jax.experimental import pallas as pl
from jax.experimental.pallas import tpu as pltpu

# ---------------- model config (matches EEGConformer_Encoder.__init__) ----------------
N_CHANS = 63            # EEG channels
N_TIMES = 250           # input_window_samples
N_FILTERS = 40          # n_filters_time == transformer emb size
FILTER_TIME_LEN = 10    # temporal conv kernel length
POOL_LEN = 25
POOL_STRIDE = 5
ATT_DEPTH = 2
ATT_HEADS = 1           # kernel assumes a single attention head
FF_EXPANSION = 4
FC_HIDDEN1 = 256
FC_HIDDEN2 = 32
N_CLASSES = 1024
BN_EPS = 1e-5
LN_EPS = 1e-5

T_CONV = N_TIMES - FILTER_TIME_LEN + 1                 # 241
SEQ_LEN = (T_CONV - POOL_LEN) // POOL_STRIDE + 1       # 44
FINAL_FC_LEN = SEQ_LEN * N_FILTERS                     # 1760 (matches final_fc_length)
SEQ_PAD = 48                                           # 44 tokens padded to 8-sublane multiple
T_PAD = 256                                            # 250 samples padded to 2 lane tiles
C_PAD = 64                                             # 63 channels padded to 8-sublane multiple
HPAD = 128                                             # q/k/v each in its own 128-lane slot
FF_DIM = FF_EXPANSION * N_FILTERS                      # 160
ATT_SCALE = 1.0 / math.sqrt(float(N_FILTERS))


# ---------------- in-kernel math helpers (traced inside the kernel) ----------------
def _elu(x):
    # ELU(alpha=1); clamp exp arg so the unselected branch stays finite.
    return jnp.where(x > 0, x, jnp.exp(jnp.minimum(x, 0.0)) - 1.0)


def _erf(z):
    # Abramowitz & Stegun 7.1.26 polynomial (|err| < 1.5e-7).
    a1, a2, a3, a4, a5 = 0.254829592, -0.284496736, 1.421413741, -1.453152027, 1.061405429
    p = 0.3275911
    s = jnp.where(z >= 0, 1.0, -1.0)
    az = jnp.abs(z)
    t = 1.0 / (1.0 + p * az)
    poly = t * (a1 + t * (a2 + t * (a3 + t * (a4 + t * a5))))
    return s * (1.0 - poly * jnp.exp(-az * az))


def _gelu_exact(x):
    # nn.GELU() default (erf form).
    return 0.5 * x * (1.0 + _erf(x * (1.0 / math.sqrt(2.0))))


def _layernorm(x, g, b):
    mu = jnp.mean(x, axis=-1, keepdims=True)
    var = jnp.mean(jnp.square(x - mu), axis=-1, keepdims=True)
    return (x - mu) * jax.lax.rsqrt(var + LN_EPS) * g + b


# ---------------- roll-direction probe (one tiny compiled kernel, cached) ----------------
@functools.cache
def _roll_shifts_to_higher():
    """True iff pltpu.roll with a positive shift moves elements toward higher indices
    (jnp.roll convention).  Probed once on the compiled path so the tap realignment
    direction is provably correct regardless of the convention."""
    def kern(x_ref, o_ref):
        o_ref[...] = pltpu.roll(x_ref[...], 1, axis=1)

    x = jax.lax.broadcasted_iota(jnp.float32, (8, 128), 1)
    y = pl.pallas_call(kern, out_shape=jax.ShapeDtypeStruct((8, 128), jnp.float32))(x)
    return bool(y[0, 1] == 0.0)


# ---------------- the single fused kernel ----------------
def _fused_forward_kernel(
        x_ref,
        # patch embedding
        wcat_ref, pool_t_ref, pbs_ref, pbb_ref, wpt_ref, bp_ref,
        # transformer blocks (stacked along depth)
        ln1g_ref, ln1b_ref, wqkv_ref, bqkv_ref, wo_ref, bo_ref,
        ln2g_ref, ln2b_ref, wff1_ref, bff1_ref, wff2_ref, bff2_ref,
        # head
        w1r_ref, bfc1_ref, wfc2_ref, bfc2_ref, wout_ref, bout_ref,
        # output
        o_ref, *, roll_to_higher):
    bf16, f32 = jnp.bfloat16, jnp.float32
    ncols = x_ref.shape[1]
    bb = ncols // T_PAD                                  # examples per grid step

    # ---- stage 1: shallownet patch embedding, batch folded into the matmul N dim ----
    xb = x_ref[...].astype(bf16)                                         # (C_PAD, bb*T_PAD)
    # temporal(1x10) + spatial(63x1) convs folded: all 10 taps in one matmul
    z = jnp.dot(wcat_ref[...], xb, preferred_element_type=f32)           # (Kt*F, bb*T_PAD)
    # realign tap k with an XLU roll (wrapped columns land at t>=241, never pooled)
    h = z[0:N_FILTERS, :]
    for k in range(1, FILTER_TIME_LEN):
        zk = z[k * N_FILTERS:(k + 1) * N_FILTERS, :]                     # aligned sublane slice
        shift = (ncols - k) if roll_to_higher else k
        h = h + pltpu.roll(zk, shift, axis=1)
    # BatchNorm2d (eval, running stats + conv bias folded) + ELU
    h = _elu(h * pbs_ref[...] + pbb_ref[...])                            # (F, bb*T_PAD) f32
    # AvgPool2d((1,25),(1,5)) per example via a small matmul; dot(a, b.T) also gives
    # the token-major (seq, emb) orientation needed by the transformer.
    parts = []
    for bi in range(bb):
        sl = h[:, bi * T_PAD:(bi + 1) * T_PAD]                           # (F, T_PAD), aligned
        parts.append(jnp.dot(pool_t_ref[...], sl.T,
                             preferred_element_type=f32))                # (SEQ_PAD, F)
    hp = parts[0] if bb == 1 else jnp.concatenate(parts, axis=0)         # (bb*SEQ_PAD, F)
    # 1x1 projection conv + Rearrange "b e 1 s -> b s e"
    x = jnp.dot(hp.astype(bf16), wpt_ref[...],
                preferred_element_type=f32) + bp_ref[...]                # (bb*SEQ_PAD, F)

    # ---- stage 2: transformer encoder (depth=2, 1 head), rows = bb*SEQ_PAD ----
    key_ok = jax.lax.broadcasted_iota(jnp.int32, (SEQ_PAD, SEQ_PAD), 1) < SEQ_LEN
    for d in range(ATT_DEPTH):
        # residual 1: x + MHA(LayerNorm(x))   (attention scale folded into q weights)
        xn = _layernorm(x, ln1g_ref[d], ln1b_ref[d]).astype(bf16)
        qkv = (jnp.dot(xn, wqkv_ref[d], preferred_element_type=f32)
               + bqkv_ref[d]).reshape(bb, SEQ_PAD, 3 * HPAD)
        q = qkv[:, :, 0:N_FILTERS].astype(bf16)
        k = qkv[:, :, HPAD:HPAD + N_FILTERS].astype(bf16)
        v = qkv[:, :, 2 * HPAD:2 * HPAD + N_FILTERS].astype(bf16)
        energy = jnp.einsum("bqd,bkd->bqk", q, k, preferred_element_type=f32)
        energy = jnp.where(key_ok, energy, -1e30)                        # mask padded keys
        m = jnp.max(energy, axis=-1, keepdims=True)
        pexp = jnp.exp(energy - m)
        att = (pexp * pl.reciprocal(jnp.sum(pexp, axis=-1, keepdims=True),
                                    approx=True)).astype(bf16)
        o = jnp.einsum("bqk,bkd->bqd", att, v,
                       preferred_element_type=f32).reshape(bb * SEQ_PAD, N_FILTERS)
        x = x + jnp.dot(o.astype(bf16), wo_ref[d],
                        preferred_element_type=f32) + bo_ref[d]
        # residual 2: x + FFN(LayerNorm(x))
        xn2 = _layernorm(x, ln2g_ref[d], ln2b_ref[d]).astype(bf16)
        hff = _gelu_exact(jnp.dot(xn2, wff1_ref[d],
                                  preferred_element_type=f32) + bff1_ref[d])
        x = x + jnp.dot(hff.astype(bf16), wff2_ref[d],
                        preferred_element_type=f32) + bff2_ref[d]

    # ---- stage 3: FC head (flatten (s, e) -> 1760), final linear, log-softmax ----
    x3 = x.reshape(bb, SEQ_PAD, N_FILTERS).astype(bf16)
    # TODO(synk): Mosaic dot_general lacks multi-contracting-dim support, so the
    # flatten-contraction stays a short loop over the 44 token positions.
    h1 = jnp.zeros((bb, FC_HIDDEN1), f32)
    for s in range(SEQ_LEN):
        h1 = h1 + jnp.dot(x3[:, s, :], w1r_ref[s], preferred_element_type=f32)
    h1 = _elu(h1 + bfc1_ref[...]).astype(bf16)
    h2 = _elu(jnp.dot(h1, wfc2_ref[...], preferred_element_type=f32)
              + bfc2_ref[...]).astype(bf16)
    logits = jnp.dot(h2, wout_ref[...], preferred_element_type=f32) + bout_ref[...]
    m = jnp.max(logits, axis=-1, keepdims=True)
    lse = m + jnp.log(jnp.sum(jnp.exp(logits - m), axis=-1, keepdims=True))
    o_ref[0] = logits - lse                                              # LogSoftmax(dim=1)


def _full_spec(a):
    return pl.BlockSpec(a.shape, lambda i, n=a.ndim: (0,) * n)


def eeg_conformer_encoder_forward(data, packed, block_b=None):
    """Fused forward pass.  data: (B, 63, 250) float32 -> (B, 1024) log-probs."""
    b = data.shape[0]
    if block_b is not None:
        bb = int(block_b)
    elif b <= 8:
        bb = b                       # single grid step (best on single-TC v5e / v6e)
    else:
        bb = min(16, -(-b // 2))     # >= 2 grid steps so v7x can use both TensorCores
    pad_b = (-b) % bb
    bt = b + pad_b
    n_blocks = bt // bb

    # pad channels->64, time->256, batch->bt, then fold batch into the time axis so the
    # kernel's conv matmul has N = bb*256 (per-example column blocks are lane aligned).
    x = jnp.pad(data.astype(jnp.float32),
                ((0, pad_b), (0, C_PAD - N_CHANS), (0, T_PAD - N_TIMES)))
    x = jnp.transpose(x, (1, 0, 2)).reshape(C_PAD, bt * T_PAD)

    kernel = functools.partial(_fused_forward_kernel,
                               roll_to_higher=_roll_shifts_to_higher())
    out = pl.pallas_call(
        kernel,
        out_shape=jax.ShapeDtypeStruct((n_blocks, bb, N_CLASSES), jnp.float32),
        grid=(n_blocks,),
        in_specs=[pl.BlockSpec((C_PAD, bb * T_PAD), lambda i: (0, i))]
        + [_full_spec(w) for w in packed],
        out_specs=pl.BlockSpec((1, bb, N_CLASSES), lambda i: (i, 0, 0)),
        compiler_params=pltpu.CompilerParams(
            dimension_semantics=("parallel",),
            vmem_limit_bytes=32 * 1024 * 1024),
    )(x, *packed)
    return out.reshape(bt, N_CLASSES)[:b]


# ---------------- deterministic synthetic parameters (PyTorch-layout) ----------------
def init_params(key):
    keys = iter(jax.random.split(key, 64))

    def dense(shape, fan_in):
        return jax.random.normal(next(keys), shape, jnp.float32) / math.sqrt(fan_in)

    def bias(shape):
        return 0.01 * jax.random.normal(next(keys), shape, jnp.float32)

    # shallownet convs, folded into one effective conv weight (Kt, F, C)
    w1 = dense((N_FILTERS, FILTER_TIME_LEN), FILTER_TIME_LEN)         # Conv2d(1, 40, (1, 10))
    b1 = bias((N_FILTERS,))
    w2 = dense((N_FILTERS, N_FILTERS, N_CHANS), N_FILTERS * N_CHANS)  # Conv2d(40, 40, (63, 1))
    b2 = bias((N_FILTERS,))
    we = jnp.einsum("fgc,gk->kfc", w2, w1)                            # (Kt, F, C)
    be = (jnp.einsum("fgc,g->f", w2, b1) + b2)[:, None]               # (F, 1)
    # BatchNorm2d in eval mode with running_mean=0, running_var=1 (synthetic)
    gamma = 1.0 + 0.1 * jax.random.normal(next(keys), (N_FILTERS,), jnp.float32)
    beta = bias((N_FILTERS,))
    bn_scale = (gamma / jnp.sqrt(1.0 + BN_EPS))[:, None]
    bn_shift = beta[:, None]
    wp = dense((N_FILTERS, N_FILTERS), N_FILTERS)                     # 1x1 projection (out, in)
    bp = bias((1, N_FILTERS))
    patch = dict(we=we, be=be, bn_scale=bn_scale, bn_shift=bn_shift, wp=wp, bp=bp)

    blocks = []
    f, e = N_FILTERS, FF_DIM
    for _ in range(ATT_DEPTH):
        blocks.append(dict(
            ln1_g=jnp.ones((1, f), jnp.float32), ln1_b=jnp.zeros((1, f), jnp.float32),
            wq=dense((f, f), f), bq=bias((1, f)),
            wk=dense((f, f), f), bk=bias((1, f)),
            wv=dense((f, f), f), bv=bias((1, f)),
            wo=dense((f, f), f), bo=bias((1, f)),
            ln2_g=jnp.ones((1, f), jnp.float32), ln2_b=jnp.zeros((1, f), jnp.float32),
            w_ff1=dense((f, e), f), b_ff1=bias((1, e)),
            w_ff2=dense((e, f), e), b_ff2=bias((1, f)),
        ))

    head = dict(
        w_fc1=dense((FINAL_FC_LEN, FC_HIDDEN1), FINAL_FC_LEN), b_fc1=bias((1, FC_HIDDEN1)),
        w_fc2=dense((FC_HIDDEN1, FC_HIDDEN2), FC_HIDDEN1), b_fc2=bias((1, FC_HIDDEN2)),
        w_out=dense((FC_HIDDEN2, N_CLASSES), FC_HIDDEN2), b_out=bias((1, N_CLASSES)),
    )
    return dict(patch=patch, blocks=blocks, head=head)


# ---------------- repack parameters into the fused kernel's operand tuple ----------------
def pack_params(p):
    bf16, f32 = jnp.bfloat16, jnp.float32
    pe = p["patch"]

    # folded temporal+spatial conv -> (Kt*F, C) padded to (Kt*F, C_PAD), bf16
    wcat = pe["we"].reshape(FILTER_TIME_LEN * N_FILTERS, N_CHANS)
    wcat = jnp.pad(wcat, ((0, 0), (0, C_PAD - N_CHANS))).astype(bf16)

    pbs = pe["bn_scale"].astype(f32)                                     # (F, 1)
    pbb = (pe["be"] * pe["bn_scale"] + pe["bn_shift"]).astype(f32)       # (F, 1)

    # transposed avg-pool matrix (SEQ_PAD, T_PAD) with 1/25 folded in; rows >= 44 and
    # columns >= 240 are zero, so padded tokens / garbage roll columns are never read.
    ss = jnp.arange(SEQ_PAD)[:, None]
    tt = jnp.arange(T_PAD)[None, :]
    pool_t = (((ss < SEQ_LEN) & (tt >= ss * POOL_STRIDE)
               & (tt < ss * POOL_STRIDE + POOL_LEN)).astype(f32) / POOL_LEN)

    wpt = pe["wp"].T.astype(bf16)                                        # (F_in, F_out)
    bp = pe["bp"].astype(f32)                                            # (1, F)

    def qkv_slot(w, b, scale=1.0):
        wpad = jnp.zeros((N_FILTERS, HPAD), f32).at[:, :N_FILTERS].set(w * scale)
        bpad = jnp.zeros((HPAD,), f32).at[:N_FILTERS].set(b.reshape(-1) * scale)
        return wpad, bpad

    wqkv, bqkv, wo, bo = [], [], [], []
    ln1g, ln1b, ln2g, ln2b = [], [], [], []
    wff1, bff1, wff2, bff2 = [], [], [], []
    for blk in p["blocks"]:
        slots = [qkv_slot(blk["wq"], blk["bq"], ATT_SCALE),   # attention scale folded into q
                 qkv_slot(blk["wk"], blk["bk"]),
                 qkv_slot(blk["wv"], blk["bv"])]
        wqkv.append(jnp.concatenate([w for w, _ in slots], axis=1))      # (F, 3*HPAD)
        bqkv.append(jnp.concatenate([b for _, b in slots])[None, :])     # (1, 3*HPAD)
        wo.append(blk["wo"]); bo.append(blk["bo"])
        ln1g.append(blk["ln1_g"]); ln1b.append(blk["ln1_b"])
        ln2g.append(blk["ln2_g"]); ln2b.append(blk["ln2_b"])
        wff1.append(blk["w_ff1"]); bff1.append(blk["b_ff1"])
        wff2.append(blk["w_ff2"]); bff2.append(blk["b_ff2"])

    st = lambda xs, dt: jnp.stack(xs, axis=0).astype(dt)
    hd = p["head"]
    w1r = hd["w_fc1"].reshape(SEQ_LEN, N_FILTERS, FC_HIDDEN1).astype(bf16)  # (S, F, 256)

    return (
        wcat, pool_t, pbs, pbb, wpt, bp,
        st(ln1g, f32), st(ln1b, f32), st(wqkv, bf16), st(bqkv, f32),
        st(wo, bf16), st(bo, f32),
        st(ln2g, f32), st(ln2b, f32), st(wff1, bf16), st(bff1, f32),
        st(wff2, bf16), st(bff2, f32),
        w1r, hd["b_fc1"].astype(f32), hd["w_fc2"].astype(bf16),
        hd["b_fc2"].astype(f32), hd["w_out"].astype(bf16), hd["b_out"].astype(f32),
    )


# ---------------- straightforward (non-Pallas) reference for a structural check ----------------
@jax.jit
def reference_forward(data, p):
    pe = p["patch"]
    t1 = jnp.arange(T_CONV)[:, None]
    s0 = jnp.arange(SEQ_LEN)[None, :] * POOL_STRIDE
    pool = ((t1 >= s0) & (t1 < s0 + POOL_LEN)).astype(jnp.float32) / POOL_LEN

    def embed_one(x):                                    # x: (C, T)
        h = jnp.zeros((N_FILTERS, T_CONV), jnp.float32)
        for k in range(FILTER_TIME_LEN):
            h = h + pe["we"][k] @ x[:, k:k + T_CONV]
        h = _elu((h + pe["be"]) * pe["bn_scale"] + pe["bn_shift"])
        hp = h @ pool                                    # (F, S)
        return hp.T @ pe["wp"].T + pe["bp"]              # (S, F)

    emb = jax.vmap(embed_one)(data)                      # (B, S, F)
    for blk in p["blocks"]:
        xn = _layernorm(emb, blk["ln1_g"], blk["ln1_b"])
        q = xn @ blk["wq"] + blk["bq"]
        k = xn @ blk["wk"] + blk["bk"]
        v = xn @ blk["wv"] + blk["bv"]
        att = jax.nn.softmax(
            jnp.einsum("bqd,bkd->bqk", q, k) / math.sqrt(N_FILTERS), axis=-1)
        emb = emb + (jnp.einsum("bqk,bkd->bqd", att, v) @ blk["wo"] + blk["bo"])
        xn2 = _layernorm(emb, blk["ln2_g"], blk["ln2_b"])
        hff = _gelu_exact(xn2 @ blk["w_ff1"] + blk["b_ff1"])
        emb = emb + (hff @ blk["w_ff2"] + blk["b_ff2"])
    hd = p["head"]
    flat = emb.reshape(emb.shape[0], -1)
    h1 = _elu(flat @ hd["w_fc1"] + hd["b_fc1"])
    h2 = _elu(h1 @ hd["w_fc2"] + hd["b_fc2"])
    logits = h2 @ hd["w_out"] + hd["b_out"]
    return jax.nn.log_softmax(logits, axis=-1)


if __name__ == "__main__":
    key = jax.random.PRNGKey(0)
    pkey, dkey = jax.random.split(key)
    params = init_params(pkey)
    packed = pack_params(params)
    data = jax.random.normal(dkey, (8, N_CHANS, N_TIMES), jnp.float32)

    out = eeg_conformer_encoder_forward(data, packed)
    out = jax.block_until_ready(out)

    assert out.shape == (8, N_CLASSES)
    assert bool(jnp.all(jnp.isfinite(out)))
    # log-softmax rows must exponentiate-sum to 1
    assert bool(jnp.allclose(jnp.sum(jnp.exp(out), axis=-1), 1.0, atol=1e-3))

    # structural check vs. a plain-JAX f32 reference (kernel uses bf16 weights and
    # activations + an approximate softmax reciprocal -> loose tolerance).
    ref = reference_forward(data, params)
    err = float(jnp.max(jnp.abs(out - ref)))
    assert err < 0.5, f"max |kernel - reference| = {err}"

    print("KERNEL_OK")
</pallas_src>

<mosaic_0001>
module attributes {stable_mosaic.version = 11 : i64} {
  func.func @kern(%arg0: memref<8x128xf32, #tpu.memory_space<vmem>>, %arg1: memref<8x128xf32, #tpu.memory_space<vmem>>) attributes {dimension_semantics = [], scalar_prefetch = 0 : i64, scratch_operands = 0 : i64, tpu.core_type = #tpu.core_type<tc>} {
    %c0 = arith.constant 0 : index
    %c0_0 = arith.constant 0 : index
    %0 = vector.load %arg0[%c0, %c0_0] : memref<8x128xf32, #tpu.memory_space<vmem>>, vector<8x128xf32>
    %c1_i32 = arith.constant 1 : i32
    %1 = tpu.dynamic_rotate %0 by %c1_i32 dim 1 : vector<8x128xf32>, i32 -> vector<8x128xf32>
    %c0_1 = arith.constant 0 : index
    %c0_2 = arith.constant 0 : index
    %2 = vector.load %arg1[%c0_1, %c0_2] : memref<8x128xf32, #tpu.memory_space<vmem>>, vector<8x128xf32>
    tpu.vector_store %arg1[%c0_1, %c0_2], %1 {strides = array<i32>} : memref<8x128xf32, #tpu.memory_space<vmem>>, vector<8x128xf32>,
    return
  }
}

</mosaic_0001>

<llo_original>
// kernel: tpu_custom_call.1
$region0: #{tpu_custom_call.1}
  #allocation0 [shape = 'u32[]', space=smem, size = 0x4, offset = 0x4, fixed_abs, tag = 'smem constant byte address 0x4 - core index']
  #allocation1 [shape = 'u32[144,128]{1,0:T(1,128)}', space=vmem, size = 0x12000, scoped, tag = 'internal scratch']
  %s0 = inlined_call_operand.hbm [shape: f32[8,128], index: 0, kind: input, shape index: {}]
  %s1 = inlined_call_operand.hbm [shape: f32[8,128], index: 1, kind: output, shape index: {}]
  %s2 = sld [smem:[#allocation0]]
  $region18: #{tpu_custom_call.1} parent=0
    _
  %s4 = ssub.s32 1, %s2
  %s5 = scalar_select 0, %s4, %s2
  $region1: #{tpu_custom_call.1} parent=0
    #allocation2 [shape = 'u8[4096]{0}', space=vmem, size = 0x1000, scoped, tag = 'input window, operand 0, single buffered']
    #allocation3 [shape = 's32[1]{0}', space=sflag, size = 0x4, scoped, tag = 'scoped memory for tpu_custom_call.1']
    #allocation4 [shape = 's32[1]{0}', space=sflag, size = 0x4, scoped, tag = 'scoped memory for tpu_custom_call.1']
    #allocation5 [shape = 'u8[4096]{0}', space=vmem, size = 0x1000, scoped, tag = 'output window, operand 0, single buffered']
    %6 = vsyncpa [#allocation3], 0
    %7 = vsyncpa [#allocation4], 0
    // Predicated region
    $region2: #{tpu_custom_call.1} parent=1 // pred_check
      _
    $region3: #{tpu_custom_call.1} parent=1 // pred_check_branch
      %9 = sbr.rel (0) target = $region5
    $region4: #{tpu_custom_call.1} parent=1 // pred_region
      %s11 = ssub.s32 128, 128
      %12 = vsyncadd [#allocation3], %s11
      %s14 = sshll.u32 [#allocation2], 4
      %s15 = int_to_ptr.vmem [resolvable:$true] %s14
      %17 = dma.hbm_to_vmem [thread:$0]  %s0, 128, %s15, [#allocation3]
    $region5: #{tpu_custom_call.1} parent=1 // pred_fallthru
      _
    // Predicated region
    $region6: #{tpu_custom_call.1} parent=1 // pred_check
      _
    $region7: #{tpu_custom_call.1} parent=1 // pred_check_branch
      %19 = sbr.rel (0) target = $region9
    $region8: #{tpu_custom_call.1} parent=1 // pred_region
      %20 = dma.done [#allocation3], 128
    $region9: #{tpu_custom_call.1} parent=1 // pred_fallthru
      _
    %v21 = vld [vmem:[#allocation2] sm:$0xff]
    %22 = vrot.lane.b32.xlu0 %v21, 1
    %v23 = vpop.permute.xlu0 %22
    %24 = vst [vmem:[#allocation5] sm:$0xff] %v23
    // Predicated region
    $region10: #{tpu_custom_call.1} parent=1 // pred_check
      _
    $region11: #{tpu_custom_call.1} parent=1 // pred_check_branch
      %26 = sbr.rel (0) target = $region13
    $region12: #{tpu_custom_call.1} parent=1 // pred_region
      %s28 = ssub.s32 128, 128
      %29 = vsyncadd [#allocation4], %s28
      %s31 = sshll.u32 [#allocation5], 4
      %s32 = int_to_ptr.vmem [resolvable:$true] %s31
      %34 = dma.vmem_to_hbm [thread:$0]  %s32, 128, %s1, [#allocation4]
    $region13: #{tpu_custom_call.1} parent=1 // pred_fallthru
      _
    // Predicated region
    $region14: #{tpu_custom_call.1} parent=1 // pred_check
      _
    $region15: #{tpu_custom_call.1} parent=1 // pred_check_branch
      %36 = sbr.rel (0) target = $region17
    $region16: #{tpu_custom_call.1} parent=1 // pred_region
      %37 = dma.done [#allocation4], 128
    $region17: #{tpu_custom_call.1} parent=1 // pred_fallthru
      _
    %38 = vsyncpa [#allocation3], 1
    %39 = vsyncpa [#allocation4], 1

</llo_original>
